<compile_context>
chip_gen: v7x
topology: tpu7x:2x2x1
jax: 0.10.0
libtpu: 0.0.40
codegen_flags: <defaults>
</compile_context>

<pallas_src>
import functools

import jax
import jax.numpy as jnp
from jax.experimental import pallas as pl
from jax.experimental.pallas import tpu as pltpu


def _rup(n, m):
    return ((n + m - 1) // m) * m


def _actor_kernel(x_ref, p_ref, o_ref, *, dims):
    state_dim, f1, f2, action_dim, r1, r2, r3 = dims

    x = x_ref[...]  # (B, state_dim) f32 — already f32, no cast needed

    # Static, aligned slices out of the packed parameter slab (free: row offsets
    # are multiples of 8 sublanes, column offsets are 0).
    w1 = p_ref[0:state_dim, 0:f1]                       # (state_dim, f1)
    w2 = p_ref[r1:r1 + f1, 0:f2]                        # (f1, f2)
    w3 = p_ref[r1 + r2:r1 + r2 + f2, 0:action_dim]      # (f2, action_dim)
    rb = r1 + r2 + r3
    b1 = p_ref[rb + 0:rb + 1, 0:f1]                     # (1, f1)
    b2 = p_ref[rb + 1:rb + 2, 0:f2]                     # (1, f2)
    b3 = p_ref[rb + 2:rb + 3, 0:action_dim]             # (1, action_dim)

    # Linear 1 + ReLU (MXU matmul, f32 accumulate; VPU max)
    h1 = jnp.maximum(jnp.dot(x, w1, preferred_element_type=jnp.float32) + b1, 0.0)
    # Linear 2 + ReLU
    h2 = jnp.maximum(jnp.dot(h1, w2, preferred_element_type=jnp.float32) + b2, 0.0)
    # Linear 3
    logits = jnp.dot(h2, w3, preferred_element_type=jnp.float32) + b3

    # Softmax along axis 0 (matches nn.Softmax(0)); divide goes to the EUP.
    m = jnp.max(logits, axis=0, keepdims=True)
    e = jnp.exp(logits - m)
    s = jnp.sum(e, axis=0, keepdims=True)
    o_ref[...] = (e * pl.reciprocal(s, approx=True)).astype(o_ref.dtype)


def pack_actor_params(params):
    """Pack w1,b1,w2,b2,w3,b3 into a single (R, 128) f32 slab (done once, host/XLA side).

    Layout (row ranges, all starting at multiples of 8 sublanes):
      [0, state_dim)            cols [0, f1)         : w1   (in, out) layout
      [r1, r1+f1)               cols [0, f2)         : w2
      [r1+r2, r1+r2+f2)         cols [0, action_dim) : w3
      row r1+r2+r3 + {0,1,2}    cols [0, out_k)      : b1, b2, b3
    """
    w1, b1, w2, b2, w3, b3 = (params["w1"], params["b1"], params["w2"],
                              params["b2"], params["w3"], params["b3"])
    state_dim, f1 = w1.shape
    f2 = w2.shape[1]
    action_dim = w3.shape[1]
    assert max(f1, f2, action_dim) <= 128, "packed slab assumes out-features <= 128"

    r1, r2, r3 = _rup(state_dim, 8), _rup(f1, 8), _rup(f2, 8)
    R = r1 + r2 + r3 + 8          # last 8-row block holds the three biases
    C = 128                        # lane-dense slab

    slab = jnp.zeros((R, C), jnp.float32)
    slab = slab.at[0:state_dim, 0:f1].set(w1)
    slab = slab.at[r1:r1 + f1, 0:f2].set(w2)
    slab = slab.at[r1 + r2:r1 + r2 + f2, 0:action_dim].set(w3)
    rb = r1 + r2 + r3
    slab = slab.at[rb + 0, 0:f1].set(b1.reshape(-1))
    slab = slab.at[rb + 1, 0:f2].set(b2.reshape(-1))
    slab = slab.at[rb + 2, 0:action_dim].set(b3.reshape(-1))

    dims = (state_dim, f1, f2, action_dim, r1, r2, r3)
    return slab, dims


def actor_forward(x, packed_params, dims):
    """x: (B, state_dim) f32. packed_params: (R, 128) f32 slab from pack_actor_params."""
    state_dim, f1, f2, action_dim, r1, r2, r3 = dims
    assert x.shape[1] == state_dim
    B = x.shape[0]

    kernel = functools.partial(_actor_kernel, dims=dims)
    vmem = pl.BlockSpec(memory_space=pltpu.MemorySpace.VMEM)
    return pl.pallas_call(
        kernel,
        out_shape=jax.ShapeDtypeStruct((B, action_dim), jnp.float32),
        in_specs=[vmem, vmem],   # 2 DMAs total: x and the packed parameter slab
        out_specs=vmem,
    )(x, packed_params)


def init_actor_params(key, state_dim, action_dim, f1=32, f2=16):
    """Deterministic synthetic init (uniform, PyTorch-Linear-like fan-in scaling)."""
    ks = jax.random.split(key, 6)

    def lin(kw, kb, fan_in, fan_out):
        bound = 1.0 / jnp.sqrt(fan_in)
        # stored as (in, out) so the kernel does x @ W (== torch x @ W.T)
        w = jax.random.uniform(kw, (fan_in, fan_out), jnp.float32, -bound, bound)
        b = jax.random.uniform(kb, (1, fan_out), jnp.float32, -bound, bound)
        return w, b

    w1, b1 = lin(ks[0], ks[1], state_dim, f1)
    w2, b2 = lin(ks[2], ks[3], f1, f2)
    w3, b3 = lin(ks[4], ks[5], f2, action_dim)
    return dict(w1=w1, b1=b1, w2=w2, b2=b2, w3=w3, b3=b3)


def _reference_forward(x, p):
    h1 = jnp.maximum(x @ p["w1"] + p["b1"], 0.0)
    h2 = jnp.maximum(h1 @ p["w2"] + p["b2"], 0.0)
    logits = h2 @ p["w3"] + p["b3"]
    return jax.nn.softmax(logits, axis=0)


if __name__ == "__main__":
    key = jax.random.PRNGKey(0)
    k_x, k_p = jax.random.split(key)

    B, state_dim, action_dim = 8, 16, 4
    x = jax.random.normal(k_x, (B, state_dim), jnp.float32)
    params = init_actor_params(k_p, state_dim, action_dim, f1=32, f2=16)

    slab, dims = pack_actor_params(params)   # one-time packing into a single VMEM slab

    out = actor_forward(x, slab, dims)
    out = jax.block_until_ready(out)

    ref = _reference_forward(x, params)
    assert out.shape == (B, action_dim)
    # Tolerance loosened slightly for pl.reciprocal(approx=True) in the softmax denom.
    assert jnp.allclose(out, ref, atol=2e-3, rtol=2e-3)

    print("KERNEL_OK")
</pallas_src>

<mosaic_0001>
module attributes {stable_mosaic.version = 11 : i64} {
  func.func @_actor_kernel(%arg0: memref<8x16xf32, #tpu.memory_space<vmem>>, %arg1: memref<72x128xf32, #tpu.memory_space<vmem>>, %arg2: memref<8x4xf32, #tpu.memory_space<vmem>>) attributes {dimension_semantics = [], scalar_prefetch = 0 : i64, scratch_operands = 0 : i64, tpu.core_type = #tpu.core_type<tc>} {
    %c0 = arith.constant 0 : index
    %c0_0 = arith.constant 0 : index
    %0 = vector.load %arg0[%c0, %c0_0] : memref<8x16xf32, #tpu.memory_space<vmem>>, vector<8x16xf32>
    %c0_1 = arith.constant 0 : index
    %c0_2 = arith.constant 0 : index
    %1 = vector.load %arg1[%c0_1, %c0_2] : memref<72x128xf32, #tpu.memory_space<vmem>>, vector<16x32xf32>
    %c16 = arith.constant 16 : index
    %c0_3 = arith.constant 0 : index
    %2 = vector.load %arg1[%c16, %c0_3] : memref<72x128xf32, #tpu.memory_space<vmem>>, vector<32x16xf32>
    %c48 = arith.constant 48 : index
    %c0_4 = arith.constant 0 : index
    %3 = vector.load %arg1[%c48, %c0_4] : memref<72x128xf32, #tpu.memory_space<vmem>>, vector<16x4xf32>
    %c64 = arith.constant 64 : index
    %c0_5 = arith.constant 0 : index
    %4 = vector.load %arg1[%c64, %c0_5] : memref<72x128xf32, #tpu.memory_space<vmem>>, vector<1x32xf32>
    %c65 = arith.constant 65 : index
    %c0_6 = arith.constant 0 : index
    %5 = vector.load %arg1[%c65, %c0_6] : memref<72x128xf32, #tpu.memory_space<vmem>>, vector<1x16xf32>
    %c66 = arith.constant 66 : index
    %c0_7 = arith.constant 0 : index
    %6 = vector.load %arg1[%c66, %c0_7] : memref<72x128xf32, #tpu.memory_space<vmem>>, vector<1x4xf32>
    %cst = arith.constant dense<0.000000e+00> : vector<8x32xf32>
    %7 = tpu.matmul %0, %1, %cst {dimension_numbers = #tpu.dot_dimension_numbers<[1], [0], [0], [1], [0, 0, 1, 1], [], []>} : vector<8x16xf32>, vector<16x32xf32>, vector<8x32xf32> -> vector<8x32xf32>
    %8 = vector.broadcast %4 : vector<1x32xf32> to vector<8x32xf32>
    %9 = arith.addf %7, %8 : vector<8x32xf32>
    %cst_8 = arith.constant 0.000000e+00 : f32
    %10 = vector.broadcast %cst_8 : f32 to vector<8x32xf32>
    %11 = arith.maximumf %9, %10 : vector<8x32xf32>
    %cst_9 = arith.constant dense<0.000000e+00> : vector<8x16xf32>
    %12 = tpu.matmul %11, %2, %cst_9 {dimension_numbers = #tpu.dot_dimension_numbers<[1], [0], [0], [1], [0, 0, 1, 1], [], []>} : vector<8x32xf32>, vector<32x16xf32>, vector<8x16xf32> -> vector<8x16xf32>
    %13 = vector.broadcast %5 : vector<1x16xf32> to vector<8x16xf32>
    %14 = arith.addf %12, %13 : vector<8x16xf32>
    %cst_10 = arith.constant 0.000000e+00 : f32
    %15 = vector.broadcast %cst_10 : f32 to vector<8x16xf32>
    %16 = arith.maximumf %14, %15 : vector<8x16xf32>
    %cst_11 = arith.constant dense<0.000000e+00> : vector<8x4xf32>
    %17 = tpu.matmul %16, %3, %cst_11 {dimension_numbers = #tpu.dot_dimension_numbers<[1], [0], [0], [1], [0, 0, 1, 1], [], []>} : vector<8x16xf32>, vector<16x4xf32>, vector<8x4xf32> -> vector<8x4xf32>
    %18 = vector.broadcast %6 : vector<1x4xf32> to vector<8x4xf32>
    %19 = arith.addf %17, %18 : vector<8x4xf32>
    %cst_12 = arith.constant dense<0xFF800000> : vector<4xf32>
    %20 = vector.multi_reduction <maximumf>, %19, %cst_12 [0] : vector<8x4xf32> to vector<4xf32>
    %21 = vector.shape_cast %20 : vector<4xf32> to vector<1x4xf32>
    %22 = vector.broadcast %21 : vector<1x4xf32> to vector<8x4xf32>
    %23 = arith.subf %19, %22 : vector<8x4xf32>
    %24 = math.exp %23 : vector<8x4xf32>
    %cst_13 = arith.constant dense<0.000000e+00> : vector<4xf32>
    %25 = vector.multi_reduction <add>, %24, %cst_13 [0] : vector<8x4xf32> to vector<4xf32>
    %26 = vector.shape_cast %25 : vector<4xf32> to vector<1x4xf32>
    %27 = tpu.reciprocal %26 {approx = true} : vector<1x4xf32> -> vector<1x4xf32>
    %28 = vector.broadcast %27 : vector<1x4xf32> to vector<8x4xf32>
    %29 = arith.mulf %24, %28 : vector<8x4xf32>
    %c0_14 = arith.constant 0 : index
    %c0_15 = arith.constant 0 : index
    %30 = vector.load %arg2[%c0_14, %c0_15] : memref<8x4xf32, #tpu.memory_space<vmem>>, vector<8x4xf32>
    tpu.vector_store %arg2[%c0_14, %c0_15], %29 {strides = array<i32>} : memref<8x4xf32, #tpu.memory_space<vmem>>, vector<8x4xf32>,
    return
  }
}

</mosaic_0001>

<llo_original>
// kernel: tpu_custom_call.1
$region0: #{tpu_custom_call.1}
  #allocation0 [shape = 'u32[]', space=smem, size = 0x4, offset = 0x4, fixed_abs, tag = 'smem constant byte address 0x4 - core index']
  #allocation1 [shape = 'u32[144,128]{1,0:T(1,128)}', space=vmem, size = 0x12000, scoped, tag = 'internal scratch']
  %s0 = inlined_call_operand.hbm [shape: f32[8,16], index: 0, kind: input, shape index: {}]
  %s1 = inlined_call_operand.hbm [shape: f32[72,128], index: 1, kind: input, shape index: {}]
  %s2 = inlined_call_operand.vmem [shape: f32[8,4], index: 2, kind: output, shape index: {}]
  %s3 = sld [smem:[#allocation0]]
  $region26: #{tpu_custom_call.1} parent=0
    _
  %s5 = ssub.s32 1, %s3
  %s6 = scalar_select 0, %s5, %s3
  $region1: #{tpu_custom_call.1} parent=0
    #allocation2 [shape = 'u8[4096]{0}', space=vmem, size = 0x1000, scoped, tag = 'input window, operand 0, single buffered']
    #allocation3 [shape = 's32[1]{0}', space=sflag, size = 0x4, scoped, tag = 'scoped memory for tpu_custom_call.1']
    #allocation4 [shape = 'u8[36864]{0}', space=vmem, size = 0x9000, scoped, tag = 'input window, operand 1, single buffered']
    #allocation5 [shape = 's32[1]{0}', space=sflag, size = 0x4, scoped, tag = 'scoped memory for tpu_custom_call.1']
    %7 = vsyncpa [#allocation3], 0
    %8 = vsyncpa [#allocation5], 0
    // Predicated region
    $region2: #{tpu_custom_call.1} parent=1 // pred_check
      _
    $region3: #{tpu_custom_call.1} parent=1 // pred_check_branch
      %10 = sbr.rel (0) target = $region5
    $region4: #{tpu_custom_call.1} parent=1 // pred_region
      %s12 = ssub.s32 128, 128
      %13 = vsyncadd [#allocation3], %s12
      %s15 = sshll.u32 [#allocation2], 4
      %s16 = int_to_ptr.vmem [resolvable:$true] %s15
      %18 = dma.hbm_to_vmem [thread:$0]  %s0, 128, %s16, [#allocation3]
    $region5: #{tpu_custom_call.1} parent=1 // pred_fallthru
      _
    // Predicated region
    $region6: #{tpu_custom_call.1} parent=1 // pred_check
      _
    $region7: #{tpu_custom_call.1} parent=1 // pred_check_branch
      %20 = sbr.rel (0) target = $region9
    $region8: #{tpu_custom_call.1} parent=1 // pred_region
      %s22 = ssub.s32 1152, 1152
      %23 = vsyncadd [#allocation5], %s22
      %s24 = sshll.u32 [#allocation4], 4
      %s25 = int_to_ptr.vmem [resolvable:$true] %s24
      %30 = dma.hbm_to_vmem [thread:$0]  %s1, 1152, %s25, [#allocation5], 128, 128, 8
    $region9: #{tpu_custom_call.1} parent=1 // pred_fallthru
      _
    // Predicated region
    $region10: #{tpu_custom_call.1} parent=1 // pred_check
      _
    $region11: #{tpu_custom_call.1} parent=1 // pred_check_branch
      %32 = sbr.rel (0) target = $region13
    $region12: #{tpu_custom_call.1} parent=1 // pred_region
      %33 = dma.done [#allocation3], 128
    $region13: #{tpu_custom_call.1} parent=1 // pred_fallthru
      _
    // Predicated region
    $region14: #{tpu_custom_call.1} parent=1 // pred_check
      _
    $region15: #{tpu_custom_call.1} parent=1 // pred_check_branch
      %35 = sbr.rel (0) target = $region17
    $region16: #{tpu_custom_call.1} parent=1 // pred_region
      %36 = dma.done [#allocation5], 1152
    $region17: #{tpu_custom_call.1} parent=1 // pred_fallthru
      _
    %v37 = vld [vmem:[#allocation2] sm:$0xff]
    %v38 = vld [vmem:[#allocation4] sm:$0xff]
    %v39 = vld [vmem:[#allocation4 + $0x8] sm:$0xff]
    %v40 = vld [vmem:[#allocation4 + $0x10] sm:$0xff]
    %v41 = vld [vmem:[#allocation4 + $0x18] sm:$0xff]
    %v42 = vld [vmem:[#allocation4 + $0x20] sm:$0xff]
    %v43 = vld [vmem:[#allocation4 + $0x28] sm:$0xff]
    %v44 = vld [vmem:[#allocation4 + $0x30] sm:$0xff]
    %v45 = vld [vmem:[#allocation4 + $0x38] sm:$0xff]
    %v46 = vld [vmem:[#allocation4 + $0x40] sm:$0x1]
    %v47 = vld [vmem:[#allocation4 + $0x41] sm:$0x1]
    %v48 = vld [vmem:[#allocation4 + $0x42] sm:$0x1]
    %v49 = vlaneseq
    %v50 = vshrl.u32 %v49, 7
    %v51 = vsub.s32 0, %v50
    %v52 = vrot.slane %v46, %v51
    %vm53 = vcmask 130048
    %v55 = vsel %vm53, %v37, 0
    %57 = vmatprep.subr.mxu0 0.0
    %58 = vmatpush1.msra.mxu0 %v38
    %59 = vmatprep.subr.mxu0 0.0
    %60 = vmatpush1.msra.mxu0 %v39
    %61 = vmatprep.subr.mxu0 0.0
    %62 = vmatpush1.msra.mxu0 0.0
    %63 = vmatprep.subr.mxu0 0.0
    %64 = vmatpush1.msra.mxu0 0.0
    %65 = vmatprep.subr.mxu0 0.0
    %66 = vmatpush1.msra.mxu0 0.0
    %67 = vmatprep.subr.mxu0 0.0
    %68 = vmatpush1.msra.mxu0 0.0
    %69 = vmatprep.subr.mxu0 0.0
    %70 = vmatpush1.msra.mxu0 0.0
    %71 = vmatprep.subr.mxu0 0.0
    %72 = vmatpush1.msra.mxu0 0.0
    %73 = vmatprep.subr.mxu0 0.0
    %74 = vmatpush1.msra.mxu0 0.0
    %75 = vmatprep.subr.mxu0 0.0
    %76 = vmatpush1.msra.mxu0 0.0
    %77 = vmatprep.subr.mxu0 0.0
    %78 = vmatpush1.msra.mxu0 0.0
    %79 = vmatprep.subr.mxu0 0.0
    %80 = vmatpush1.msra.mxu0 0.0
    %81 = vmatprep.subr.mxu0 0.0
    %82 = vmatpush1.msra.mxu0 0.0
    %83 = vmatprep.subr.mxu0 0.0
    %84 = vmatpush1.msra.mxu0 0.0
    %85 = vmatprep.subr.mxu0 0.0
    %86 = vmatpush1.msra.mxu0 0.0
    %87 = vmatprep.subr.mxu0 0.0
    %88 = vmatpush1.msra.mxu0 0.0
    %89 = vmatprep.subr.mxu0 0.0
    %90 = vmatpush1.msra.mxu0 0.0
    %91 = vmatprep.subr.mxu0 0.0
    %92 = vmatpush1.msra.mxu0 0.0
    %93 = vmatprep.subr.mxu0 0.0
    %94 = vmatpush1.msra.mxu0 0.0
    %95 = vmatprep.subr.mxu0 0.0
    %96 = vmatpush1.msra.mxu0 0.0
    %97 = vmatprep.subr.mxu0 0.0
    %98 = vmatpush1.msra.mxu0 0.0
    %99 = vmatprep.subr.mxu0 0.0
    %100 = vmatpush1.msra.mxu0 0.0
    %101 = vmatprep.subr.mxu0 0.0
    %102 = vmatpush1.msra.mxu0 0.0
    %103 = vmatprep.subr.mxu0 0.0
    %104 = vmatpush1.msra.mxu0 0.0
    %105 = vmatprep.subr.mxu0 0.0
    %106 = vmatpush1.msra.mxu0 0.0
    %107 = vmatprep.subr.mxu0 0.0
    %108 = vmatpush1.msra.mxu0 0.0
    %109 = vmatprep.subr.mxu0 0.0
    %110 = vmatpush1.msra.mxu0 0.0
    %111 = vmatprep.subr.mxu0 0.0
    %112 = vmatpush1.msra.mxu0 0.0
    %113 = vmatprep.subr.mxu0 0.0
    %114 = vmatpush1.msra.mxu0 0.0
    %115 = vmatprep.subr.mxu0 0.0
    %116 = vmatpush1.msra.mxu0 0.0
    %117 = vmatprep.subr.mxu0 0.0
    %118 = vmatpush1.msra.mxu0 0.0
    %119 = vmatprep.subr.mxu0 0.0
    %120 = vmatpush1.msra.mxu0 0.0
    %121 = vmatprep.mubr.f32.mxu0 0.0
    %122 = vmatmul.mubr.f32.gmra.mrb[0].mxu0 %v55
    %v123 = vpop.f32.mrb[0].mxu0
    %v124 = vadd.f32 %v52, %v123
    %v125 = vpop.f32.mrb[0].mxu0
    %126 = vdwg.mxu0
    %v127 = vmax.f32 %v124, 0.0
    %v128 = vlaneseq
    %v129 = vshrl.u32 %v128, 7
    %v130 = vsub.s32 0, %v129
    %v131 = vrot.slane %v47, %v130
    %vm132 = vcmask 261120
    %v134 = vsel %vm132, %v127, 0
    %136 = vmatprep.subr.mxu0 0.0
    %137 = vmatpush1.msra.mxu0 %v40
    %138 = vmatprep.subr.mxu0 0.0
    %139 = vmatpush1.msra.mxu0 %v41
    %140 = vmatprep.subr.mxu0 0.0
    %141 = vmatpush1.msra.mxu0 %v42
    %142 = vmatprep.subr.mxu0 0.0
    %143 = vmatpush1.msra.mxu0 %v43
    %144 = vmatprep.subr.mxu0 0.0
    %145 = vmatpush1.msra.mxu0 0.0
    %146 = vmatprep.subr.mxu0 0.0
    %147 = vmatpush1.msra.mxu0 0.0
    %148 = vmatprep.subr.mxu0 0.0
    %149 = vmatpush1.msra.mxu0 0.0
    %150 = vmatprep.subr.mxu0 0.0
    %151 = vmatpush1.msra.mxu0 0.0
    %152 = vmatprep.subr.mxu0 0.0
    %153 = vmatpush1.msra.mxu0 0.0
    %154 = vmatprep.subr.mxu0 0.0
    %155 = vmatpush1.msra.mxu0 0.0
    %156 = vmatprep.subr.mxu0 0.0
    %157 = vmatpush1.msra.mxu0 0.0
    %158 = vmatprep.subr.mxu0 0.0
    %159 = vmatpush1.msra.mxu0 0.0
    %160 = vmatprep.subr.mxu0 0.0
    %161 = vmatpush1.msra.mxu0 0.0
    %162 = vmatprep.subr.mxu0 0.0
    %163 = vmatpush1.msra.mxu0 0.0
    %164 = vmatprep.subr.mxu0 0.0
    %165 = vmatpush1.msra.mxu0 0.0
    %166 = vmatprep.subr.mxu0 0.0
    %167 = vmatpush1.msra.mxu0 0.0
    %168 = vmatprep.subr.mxu0 0.0
    %169 = vmatpush1.msra.mxu0 0.0
    %170 = vmatprep.subr.mxu0 0.0
    %171 = vmatpush1.msra.mxu0 0.0
    %172 = vmatprep.subr.mxu0 0.0
    %173 = vmatpush1.msra.mxu0 0.0
    %174 = vmatprep.subr.mxu0 0.0
    %175 = vmatpush1.msra.mxu0 0.0
    %176 = vmatprep.subr.mxu0 0.0
    %177 = vmatpush1.msra.mxu0 0.0
    %178 = vmatprep.subr.mxu0 0.0
    %179 = vmatpush1.msra.mxu0 0.0
    %180 = vmatprep.subr.mxu0 0.0
    %181 = vmatpush1.msra.mxu0 0.0
    %182 = vmatprep.subr.mxu0 0.0
    %183 = vmatpush1.msra.mxu0 0.0
    %184 = vmatprep.subr.mxu0 0.0
    %185 = vmatpush1.msra.mxu0 0.0
    %186 = vmatprep.subr.mxu0 0.0
    %187 = vmatpush1.msra.mxu0 0.0
    %188 = vmatprep.subr.mxu0 0.0
    %189 = vmatpush1.msra.mxu0 0.0
    %190 = vmatprep.subr.mxu0 0.0
    %191 = vmatpush1.msra.mxu0 0.0
    %192 = vmatprep.subr.mxu0 0.0
    %193 = vmatpush1.msra.mxu0 0.0
    %194 = vmatprep.subr.mxu0 0.0
    %195 = vmatpush1.msra.mxu0 0.0
    %196 = vmatprep.subr.mxu0 0.0
    %197 = vmatpush1.msra.mxu0 0.0
    %198 = vmatprep.subr.mxu0 0.0
    %199 = vmatpush1.msra.mxu0 0.0
    %200 = vmatprep.mubr.f32.mxu0 0.0
    %201 = vmatmul.mubr.f32.gmra.mrb[0].mxu0 %v134
    %v202 = vpop.f32.mrb[0].mxu0
    %v203 = vadd.f32 %v131, %v202
    %v204 = vpop.f32.mrb[0].mxu0
    %205 = vdwg.mxu0
    %v206 = vmax.f32 %v203, 0.0
    %v207 = vlaneseq
    %v208 = vshrl.u32 %v207, 7
    %v209 = vsub.s32 0, %v208
    %v210 = vrot.slane %v48, %v209
    %v212 = vsel %vm53, %v206, 0
    %214 = vmatprep.subr.mxu0 0.0
    %215 = vmatpush1.msra.mxu0 %v44
    %216 = vmatprep.subr.mxu0 0.0
    %217 = vmatpush1.msra.mxu0 %v45
    %218 = vmatprep.subr.mxu0 0.0
    %219 = vmatpush1.msra.mxu0 0.0
    %220 = vmatprep.subr.mxu0 0.0
    %221 = vmatpush1.msra.mxu0 0.0
    %222 = vmatprep.subr.mxu0 0.0
    %223 = vmatpush1.msra.mxu0 0.0
    %224 = vmatprep.subr.mxu0 0.0
    %225 = vmatpush1.msra.mxu0 0.0
    %226 = vmatprep.subr.mxu0 0.0
    %227 = vmatpush1.msra.mxu0 0.0
    %228 = vmatprep.subr.mxu0 0.0
    %229 = vmatpush1.msra.mxu0 0.0
    %230 = vmatprep.subr.mxu0 0.0
    %231 = vmatpush1.msra.mxu0 0.0
    %232 = vmatprep.subr.mxu0 0.0
    %233 = vmatpush1.msra.mxu0 0.0
    %234 = vmatprep.subr.mxu0 0.0
    %235 = vmatpush1.msra.mxu0 0.0
    %236 = vmatprep.subr.mxu0 0.0
    %237 = vmatpush1.msra.mxu0 0.0
    %238 = vmatprep.subr.mxu0 0.0
    %239 = vmatpush1.msra.mxu0 0.0
    %240 = vmatprep.subr.mxu0 0.0
    %241 = vmatpush1.msra.mxu0 0.0
    %242 = vmatprep.subr.mxu0 0.0
    %243 = vmatpush1.msra.mxu0 0.0
    %244 = vmatprep.subr.mxu0 0.0
    %245 = vmatpush1.msra.mxu0 0.0
    %246 = vmatprep.subr.mxu0 0.0
    %247 = vmatpush1.msra.mxu0 0.0
    %248 = vmatprep.subr.mxu0 0.0
    %249 = vmatpush1.msra.mxu0 0.0
    %250 = vmatprep.subr.mxu0 0.0
    %251 = vmatpush1.msra.mxu0 0.0
    %252 = vmatprep.subr.mxu0 0.0
    %253 = vmatpush1.msra.mxu0 0.0
    %254 = vmatprep.subr.mxu0 0.0
    %255 = vmatpush1.msra.mxu0 0.0
    %256 = vmatprep.subr.mxu0 0.0
    %257 = vmatpush1.msra.mxu0 0.0
    %258 = vmatprep.subr.mxu0 0.0
    %259 = vmatpush1.msra.mxu0 0.0
    %260 = vmatprep.subr.mxu0 0.0
    %261 = vmatpush1.msra.mxu0 0.0
    %262 = vmatprep.subr.mxu0 0.0
    %263 = vmatpush1.msra.mxu0 0.0
    %264 = vmatprep.subr.mxu0 0.0
    %265 = vmatpush1.msra.mxu0 0.0
    %266 = vmatprep.subr.mxu0 0.0
    %267 = vmatpush1.msra.mxu0 0.0
    %268 = vmatprep.subr.mxu0 0.0
    %269 = vmatpush1.msra.mxu0 0.0
    %270 = vmatprep.subr.mxu0 0.0
    %271 = vmatpush1.msra.mxu0 0.0
    %272 = vmatprep.subr.mxu0 0.0
    %273 = vmatpush1.msra.mxu0 0.0
    %274 = vmatprep.subr.mxu0 0.0
    %275 = vmatpush1.msra.mxu0 0.0
    %276 = vmatprep.subr.mxu0 0.0
    %277 = vmatpush1.msra.mxu0 0.0
    %278 = vmatprep.mubr.f32.mxu0 0.0
    %279 = vmatmul.mubr.f32.gmra.mrb[0].mxu0 %v212
    %v280 = vpop.f32.mrb[0].mxu0
    %v281 = vadd.f32 %v210, %v280
    %v282 = vpop.f32.mrb[0].mxu0
    %283 = vdwg.mxu0
    %vm284 = vcmask 31744
    %v285 = vsel %vm284, %v281, -inf
    %v286 = vrot.slane %v285, 4
    %v287 = vmax.f32 %v285, %v286
    %v288 = vrot.slane %v287, 2
    %v289 = vmax.f32 %v287, %v288
    %v290 = vrot.slane %v289, 1
    %v291 = vmax.f32 %v289, %v290
    %v292 = vsub.f32 %v281, %v291
    %v293 = vmul.f32 %v292, 1.442695
    %v294 = vpow.pop %v293
    %v295 = vsel %vm284, %v294, 0.0
    %v296 = vrot.slane %v295, 4
    %v297 = vadd.f32 %v295, %v296
    %v298 = vrot.slane %v297, 2
    %v299 = vadd.f32 %v297, %v298
    %v300 = vrot.slane %v299, 1
    %v301 = vadd.f32 %v299, %v300
    %v302 = vrcp.pop %v301
    %v303 = vmul.f32 %v294, %v302
    %304 = vst.msk [vmem:[%s2] sm:$0xff] %vm284, %v303
    // Predicated region
    $region18: #{tpu_custom_call.1} parent=1 // pred_check
      _
    $region19: #{tpu_custom_call.1} parent=1 // pred_check_branch
      %306 = sbr.rel (0) target = $region21
    $region20: #{tpu_custom_call.1} parent=1 // pred_region
      _
    $region21: #{tpu_custom_call.1} parent=1 // pred_fallthru
      _
    // Predicated region
    $region22: #{tpu_custom_call.1} parent=1 // pred_check
      _
    $region23: #{tpu_custom_call.1} parent=1 // pred_check_branch
      %308 = sbr.rel (0) target = $region25
    $region24: #{tpu_custom_call.1} parent=1 // pred_region
      _
    $region25: #{tpu_custom_call.1} parent=1 // pred_fallthru
      _
    %309 = vsyncpa [#allocation3], 1
    %310 = vsyncpa [#allocation5], 1

</llo_original>
